<compile_context>
chip_gen: v7x
topology: tpu7x:2x2x1
jax: 0.10.0
libtpu: 0.0.40
codegen_flags: <defaults>
</compile_context>

<pallas_src>
import functools

import jax
import jax.numpy as jnp
from jax.experimental import pallas as pl
from jax.experimental.pallas import tpu as pltpu


def patch_embed_kernel(x_ref, w_ref, b_ref, o_ref):
    # x_ref: (TM, K) bf16   w_ref: (K, Ep) bf16   b_ref: (1, Ep) f32   o_ref: (TM, Ep) f32
    acc = jnp.dot(x_ref[...], w_ref[...], preferred_element_type=jnp.float32)
    o_ref[...] = (acc + b_ref[...]).astype(o_ref.dtype)


def _pick_row_tile(M):
    # Large tiles amortize the ~0.35us per-grid-step overhead, but keep at
    # least 2 grid steps when possible so both v7x TensorCores get work.
    if M >= 1024:
        return 512
    half = -(-M // 2)                      # ceil(M / 2)
    return max(8, min(512, -(-half // 8) * 8))


def prepare_vit_patch_params(conv_w, conv_b):
    """One-time (per-init) weight prep: (E,C,p,p,p) -> lane-dense bf16 (K, Ep).

    Hoisted out of the forward path so the HBM transpose/pad of the weight is
    not paid on every call.
    """
    E, C, p, _, _ = conv_w.shape
    K = C * p * p * p
    Ep = ((E + 127) // 128) * 128          # lane-dense output / MXU columns
    w = conv_w.reshape(E, K).T.astype(jnp.bfloat16)          # (K, E), matches (c,kt,kh,kw) order
    w = jnp.pad(w, ((0, 0), (0, Ep - E)))                    # zero columns -> exact slice later
    b = jnp.pad(conv_b.astype(jnp.float32), (0, Ep - E)).reshape(1, Ep)
    return w, b


@functools.partial(jax.jit, static_argnames=("patch_size", "embed_dims"))
def vit_patch_forward(img, w_pad, b_pad, *, patch_size, embed_dims):
    """img: (B, T, C, H, W); w_pad: (K, Ep) bf16; b_pad: (1, Ep) f32.
    Returns (B, Np, embed_dims) with Np = (T//p)*(H//p)*(W//p), matching ViTPatch."""
    p = patch_size
    B, T, C, H, W = img.shape
    nt, nh, nw = T // p, H // p, W // p
    Np = nt * nh * nw
    K = C * p * p * p
    M = B * Np
    Ep = w_pad.shape[1]

    # ---- im2col (layout only).  Feature order (c, kt, kh, kw) matches the
    # Conv3d weight reduction order; patch order (dt, dh, dw) matches flatten(2).
    x = jnp.transpose(img, (0, 2, 1, 3, 4))                    # (B, C, T, H, W)
    x = x.reshape(B, C, nt, p, nh, p, nw, p)
    x = jnp.transpose(x, (0, 2, 4, 6, 1, 3, 5, 7))             # (B, nt, nh, nw, C, p, p, p)
    x = x.reshape(M, K).astype(jnp.bfloat16)                   # bf16 row stream for the MXU

    # ---- row tiling: weights resident, rows streamed (ragged last block, no pad).
    TM = _pick_row_tile(M)
    grid = (pl.cdiv(M, TM),)

    # Double-buffered x/out tiles + weight + bias, with 2x headroom; cap at
    # v7x's 64 MiB physical VMEM, floor at the common 16 MiB scoped default.
    need = 2 * TM * K * 2 + 2 * K * Ep * 2 + 2 * Ep * 4 + 2 * TM * Ep * 4
    vmem_limit = int(min(max(2 * need, 16 << 20), 64 << 20))

    cost = pl.CostEstimate(
        flops=2 * M * K * Ep,
        transcendentals=0,
        bytes_accessed=2 * M * K + 2 * K * Ep + 4 * Ep + 4 * M * Ep,
    )

    out = pl.pallas_call(
        patch_embed_kernel,
        out_shape=jax.ShapeDtypeStruct((M, Ep), jnp.float32),
        grid_spec=pltpu.PrefetchScalarGridSpec(
            num_scalar_prefetch=0,
            grid=grid,
            in_specs=[
                pl.BlockSpec((TM, K), lambda i: (i, 0)),   # streamed rows (bf16)
                pl.BlockSpec((K, Ep), lambda i: (0, 0)),   # resident weight (bf16)
                pl.BlockSpec((1, Ep), lambda i: (0, 0)),   # resident bias (f32)
            ],
            out_specs=pl.BlockSpec((TM, Ep), lambda i: (i, 0)),
        ),
        compiler_params=pltpu.CompilerParams(
            dimension_semantics=("parallel",),             # shard row axis across TCs
            vmem_limit_bytes=vmem_limit,
            allow_input_fusion=[True, False, False],       # fuse im2col into the x operand read
        ),
        cost_estimate=cost,
    )(x, w_pad, b_pad)

    return out[:, :embed_dims].reshape(B, Np, embed_dims)


def vit_patch_reference(img, conv_w, conv_b, patch_size):
    """Pure-JAX reference mirroring the PyTorch ViTPatch forward (f32)."""
    p = patch_size
    x = jnp.transpose(img, (0, 2, 1, 3, 4))                    # (B, C, T, H, W)
    y = jax.lax.conv_general_dilated(
        x, conv_w, window_strides=(p, p, p), padding="VALID",
        dimension_numbers=("NCDHW", "OIDHW", "NCDHW"))
    y = y + conv_b.reshape(1, -1, 1, 1, 1)
    B, E = y.shape[0], y.shape[1]
    return y.reshape(B, E, -1).transpose(0, 2, 1)               # (B, Np, E)


if __name__ == "__main__":
    # Small shapes consistent with the module: batch=2, channels=4,
    # spatial=16x16, seq(T)=8, patch_size=4, embedding_dims=32.
    B, T, C, H, W = 2, 8, 4, 16, 16
    p = 4
    E = 32

    key = jax.random.PRNGKey(0)
    k1, k2, k3 = jax.random.split(key, 3)
    img = jax.random.normal(k1, (B, T, C, H, W), dtype=jnp.float32)
    conv_w = 0.05 * jax.random.normal(k2, (E, C, p, p, p), dtype=jnp.float32)
    conv_b = 0.05 * jax.random.normal(k3, (E,), dtype=jnp.float32)

    w_pad, b_pad = prepare_vit_patch_params(conv_w, conv_b)
    out = vit_patch_forward(img, w_pad, b_pad, patch_size=p, embed_dims=E)
    out = jax.block_until_ready(out)

    Np = (T // p) * (H // p) * (W // p)
    assert out.shape == (B, Np, E), out.shape

    ref = vit_patch_reference(img, conv_w, conv_b, p)
    # bf16 MXU inputs with f32 accumulation -> loosen tolerance accordingly.
    assert jnp.allclose(out, ref, atol=2e-2, rtol=2e-2), \
        float(jnp.max(jnp.abs(out - ref)))

    print("KERNEL_OK")
</pallas_src>

<mosaic_0001>
module attributes {stable_mosaic.version = 11 : i64} {
  func.func @patch_embed_kernel(%arg0: i32, %arg1: memref<32x256xbf16, #tpu.memory_space<vmem>>, %arg2: memref<256x128xbf16, #tpu.memory_space<vmem>>, %arg3: memref<1x128xf32, #tpu.memory_space<vmem>>, %arg4: memref<32x128xf32, #tpu.memory_space<vmem>>) attributes {dimension_semantics = [#tpu.dimension_semantics<parallel>], iteration_bounds = array<i64: 2>, scalar_prefetch = 0 : i64, scratch_operands = 0 : i64, tpu.core_type = #tpu.core_type<tc>, window_params = [{transform_indices = @transform_0, window_bounds = array<i64: 32, 256>}, {pipeline_mode = #tpu.pipeline_mode<synchronous>, transform_indices = @transform_1, window_bounds = array<i64: 256, 128>}, {pipeline_mode = #tpu.pipeline_mode<synchronous>, transform_indices = @transform_2, window_bounds = array<i64: 1, 128>}, {transform_indices = @transform_3, window_bounds = array<i64: 32, 128>}]} {
    %c0 = arith.constant 0 : index
    %c0_0 = arith.constant 0 : index
    %0 = vector.load %arg1[%c0, %c0_0] : memref<32x256xbf16, #tpu.memory_space<vmem>>, vector<32x256xbf16>
    %c0_1 = arith.constant 0 : index
    %c0_2 = arith.constant 0 : index
    %1 = vector.load %arg2[%c0_1, %c0_2] : memref<256x128xbf16, #tpu.memory_space<vmem>>, vector<256x128xbf16>
    %cst = arith.constant dense<0.000000e+00> : vector<32x128xf32>
    %2 = tpu.matmul %0, %1, %cst {dimension_numbers = #tpu.dot_dimension_numbers<[1], [0], [0], [1], [0, 0, 1, 1], [], []>} : vector<32x256xbf16>, vector<256x128xbf16>, vector<32x128xf32> -> vector<32x128xf32>
    %c0_3 = arith.constant 0 : index
    %c0_4 = arith.constant 0 : index
    %3 = vector.load %arg3[%c0_3, %c0_4] : memref<1x128xf32, #tpu.memory_space<vmem>>, vector<1x128xf32>
    %4 = vector.broadcast %3 : vector<1x128xf32> to vector<32x128xf32>
    %5 = arith.addf %2, %4 : vector<32x128xf32>
    %c0_5 = arith.constant 0 : index
    %c0_6 = arith.constant 0 : index
    %6 = vector.load %arg4[%c0_5, %c0_6] : memref<32x128xf32, #tpu.memory_space<vmem>>, vector<32x128xf32>
    tpu.vector_store %arg4[%c0_5, %c0_6], %5 {strides = array<i32>} : memref<32x128xf32, #tpu.memory_space<vmem>>, vector<32x128xf32>,
    return
  }
  func.func @transform_0(%arg0: i32) -> (i32, i32) {
    %c0_i32 = arith.constant 0 : i32
    %c0_i32_0 = arith.constant 0 : i32
    return %arg0, %c0_i32 : i32, i32
  }
  func.func @transform_1(%arg0: i32) -> (i32, i32) {
    %c0_i32 = arith.constant 0 : i32
    %c0_i32_0 = arith.constant 0 : i32
    %c0_i32_1 = arith.constant 0 : i32
    return %c0_i32, %c0_i32_0 : i32, i32
  }
  func.func @transform_2(%arg0: i32) -> (i32, i32) {
    %c0_i32 = arith.constant 0 : i32
    %c0_i32_0 = arith.constant 0 : i32
    %c0_i32_1 = arith.constant 0 : i32
    return %c0_i32, %c0_i32_0 : i32, i32
  }
  func.func @transform_3(%arg0: i32) -> (i32, i32) {
    %c0_i32 = arith.constant 0 : i32
    %c0_i32_0 = arith.constant 0 : i32
    return %arg0, %c0_i32 : i32, i32
  }
}

</mosaic_0001>

<llo_original>
// kernel: vit_patch_forward.1
$region0: #{vit_patch_forward.1}
  #allocation0 [shape = 'u32[]', space=smem, size = 0x4, offset = 0x4, fixed_abs, tag = 'smem constant byte address 0x4 - core index']
  #allocation1 [shape = 'u32[144,128]{1,0:T(1,128)}', space=vmem, size = 0x12000, scoped, tag = 'internal scratch']
  %s0 = inlined_call_operand.vmem [shape: bf16[64,256], index: 0, kind: input, shape index: {}]
  %s1 = inlined_call_operand.vmem [shape: bf16[256,128], index: 1, kind: input, shape index: {}]
  %s2 = inlined_call_operand.vmem [shape: f32[1,128], index: 2, kind: input, shape index: {}]
  %s3 = inlined_call_operand.hbm [shape: f32[64,128], index: 3, kind: output, shape index: {}]
  %s4 = sld [smem:[#allocation0]]
  $region45: #{vit_patch_forward.1} parent=0
    _
  %s6 = ssub.s32 1, %s4
  %s7 = scalar_select 0, %s6, %s4
  $region1: #{vit_patch_forward.1} parent=0
    #allocation2 [shape = 'u8[32768]{0}', space=vmem, size = 0x8000, scoped, tag = 'output window, operand 0']
    #allocation3 [shape = 's32[2]{0}', space=sflag, size = 0x8, scoped, tag = 'scoped memory for vit_patch_forward.1']
    %8 = vsyncpa [#allocation3], 0
    %s9 = scalar_lea.sflag [#allocation3], 1
    %10 = vsyncpa %s9, 0
    loop: start=0, step=1, limit=4
    $region2: #{vit_patch_forward.1} parent=1 // loop_pre_header
      _
    $region3: #{vit_patch_forward.1} parent=1 // loop_header
      %s12 = sphi 0, %s16
      %p13 = scmp.ge.s32.totalorder %s12, 4
      %s22 = sphi 0, %s24
      %s25 = sphi 0, %s22
      %s26 = sphi 0, %s25
      %s42 = sphi 0, %s26
      %s46 = sphi 0, %s46
      %s48 = sphi 0, %s46
      %s49 = sphi 0, %s48
      %s63 = sphi 0, %s49
      %s67 = sphi 0, %s67
      %s69 = sphi 0, %s67
      %s70 = sphi 0, %s69
      %s84 = sphi 0, %s70
      %s90 = sphi 0, %s92
      %s93 = sphi 0, %s90
      %s94 = sphi 0, %s93
      %s110 = sphi 0, %s94
    $region4: #{vit_patch_forward.1} parent=1 // loop_header_branch
      %15 = sbr.rel (%p13) target = $region8
    $region5: #{vit_patch_forward.1} parent=1 // loop_body
      %s17 = ssub.s32 %s12, 1
      %s18 = ssub.s32 %s12, 2
      %s19 = sadd.s32 %s12, 1
      %s20 = ssub.s32 %s12, %s19
      %p21 = scmp.eq.s32.totalorder %s20, 0
      %s23 = sadd.s32 %s22, 1
      %s24 = scalar_select %p21, %s22, %s23
      %p27 = pneg %p21
      %p28 = scmp.eq.s32.totalorder %s12, 1
      %p29 = por %p27, %p28
      %p30 = scmp.ne.s32.totalorder %s22, %s25
      %p31 = scmp.eq.s32.totalorder %s12, 0
      %p32 = por %p30, %p31
      %p33 = scmp.ne.s32.totalorder %s22, %s25
      %p34 = scmp.eq.s32.totalorder %s17, 1
      %p35 = por %p33, %p34
      %p36 = scmp.ne.s32.totalorder %s25, %s26
      %p37 = scmp.eq.s32.totalorder %s17, 0
      %p38 = por %p36, %p37
      %p39 = scmp.ne.s32.totalorder %s25, %s26
      %p40 = scmp.eq.s32.totalorder %s18, 1
      %p41 = por %p39, %p40
      %p43 = scmp.ne.s32.totalorder %s26, %s42
      %p44 = scmp.eq.s32.totalorder %s18, 0
      %p45 = por %p43, %p44
      %s47 = sadd.s32 %s46, 1
      %p50 = scmp.eq.s32.totalorder %s12, 1
      %p51 = scmp.ne.s32.totalorder %s46, %s48
      %p52 = scmp.eq.s32.totalorder %s12, 0
      %p53 = por %p51, %p52
      %p54 = scmp.ne.s32.totalorder %s46, %s48
      %p55 = scmp.eq.s32.totalorder %s17, 1
      %p56 = por %p54, %p55
      %p57 = scmp.ne.s32.totalorder %s48, %s49
      %p58 = scmp.eq.s32.totalorder %s17, 0
      %p59 = por %p57, %p58
      %p60 = scmp.ne.s32.totalorder %s48, %s49
      %p61 = scmp.eq.s32.totalorder %s18, 1
      %p62 = por %p60, %p61
      %p64 = scmp.ne.s32.totalorder %s49, %s63
      %p65 = scmp.eq.s32.totalorder %s18, 0
      %p66 = por %p64, %p65
      %s68 = sadd.s32 %s67, 1
      %p71 = scmp.eq.s32.totalorder %s12, 1
      %p72 = scmp.ne.s32.totalorder %s67, %s69
      %p73 = scmp.eq.s32.totalorder %s12, 0
      %p74 = por %p72, %p73
      %p75 = scmp.ne.s32.totalorder %s67, %s69
      %p76 = scmp.eq.s32.totalorder %s17, 1
      %p77 = por %p75, %p76
      %p78 = scmp.ne.s32.totalorder %s69, %s70
      %p79 = scmp.eq.s32.totalorder %s17, 0
      %p80 = por %p78, %p79
      %p81 = scmp.ne.s32.totalorder %s69, %s70
      %p82 = scmp.eq.s32.totalorder %s18, 1
      %p83 = por %p81, %p82
      %p85 = scmp.ne.s32.totalorder %s70, %s84
      %p86 = scmp.eq.s32.totalorder %s18, 0
      %p87 = por %p85, %p86
      %s88 = ssub.s32 %s12, %s19
      %p89 = scmp.eq.s32.totalorder %s88, 0
      %s91 = sadd.s32 %s90, 1
      %s92 = scalar_select %p89, %s90, %s91
      %p95 = pneg %p89
      %p96 = scmp.eq.s32.totalorder %s12, 1
      %p97 = por %p95, %p96
      %p98 = scmp.ne.s32.totalorder %s90, %s93
      %p99 = scmp.eq.s32.totalorder %s12, 0
      %p100 = por %p98, %p99
      %p101 = scmp.ne.s32.totalorder %s90, %s93
      %p102 = scmp.eq.s32.totalorder %s17, 1
      %p103 = por %p101, %p102
      %p104 = scmp.ne.s32.totalorder %s93, %s94
      %p105 = scmp.eq.s32.totalorder %s17, 0
      %p106 = por %p104, %p105
      %p107 = scmp.ne.s32.totalorder %s93, %s94
      %p108 = scmp.eq.s32.totalorder %s18, 1
      %p109 = por %p107, %p108
      %p111 = scmp.ne.s32.totalorder %s94, %s110
      %p112 = scmp.eq.s32.totalorder %s18, 0
      %p113 = por %p111, %p112
      %p114 = scmp.le.s32.totalorder 1, %s12
      %p115 = scmp.lt.s32.totalorder %s12, 3
      %p116 = pnand %p114, %p115
      %p117 = pneg %p116
      // Predicated region
      $region9: #{vit_patch_forward.1} parent=5 // pred_check
        _
      $region10: #{vit_patch_forward.1} parent=5 // pred_check_branch
        %119 = sbr.rel (%p116) target = $region12
      $region11: #{vit_patch_forward.1} parent=5 // pred_region
        %s120 = ssub.s32 %s12, 1
        // Predicated region
        $region13: #{vit_patch_forward.1} parent=11 // pred_check
          %p121 = pneg %p59
        $region14: #{vit_patch_forward.1} parent=11 // pred_check_branch
          %123 = sbr.rel (%p121) target = $region16
        $region15: #{vit_patch_forward.1} parent=11 // pred_region
          _
        $region16: #{vit_patch_forward.1} parent=11 // pred_fallthru
          _
        // Predicated region
        $region17: #{vit_patch_forward.1} parent=11 // pred_check
          %p124 = pneg %p80
        $region18: #{vit_patch_forward.1} parent=11 // pred_check_branch
          %126 = sbr.rel (%p124) target = $region20
        $region19: #{vit_patch_forward.1} parent=11 // pred_region
          _
        $region20: #{vit_patch_forward.1} parent=11 // pred_fallthru
          _
      $region12: #{vit_patch_forward.1} parent=5 // pred_fallthru
        _
      %p127 = scmp.lt.s32.totalorder %s12, 2
      // Predicated region
      $region21: #{vit_patch_forward.1} parent=5 // pred_check
        %p128 = pneg %p127
      $region22: #{vit_patch_forward.1} parent=5 // pred_check_branch
        %130 = sbr.rel (%p128) target = $region24
      $region23: #{vit_patch_forward.1} parent=5 // pred_region
        // Predicated region
        $region25: #{vit_patch_forward.1} parent=23 // pred_check
          %p131 = pneg %p32
        $region26: #{vit_patch_forward.1} parent=23 // pred_check_branch
          %133 = sbr.rel (%p131) target = $region28
        $region27: #{vit_patch_forward.1} parent=23 // pred_region
          %s134 = smul.u32 4, %s12
          %p135 = scmp.lt.s32.totalorder %s134, 7
          %s136 = scalar_select %p135, %s134, 7
          %s137 = smul.addr %s136, 2
          %s138 = smul.addr %s137, 4
          %s139 = scalar_lea.vmem %s0, %s138
          %s140 = smul.u32 4, %s12
        $region28: #{vit_patch_forward.1} parent=23 // pred_fallthru
          _
      $region24: #{vit_patch_forward.1} parent=5 // pred_fallthru
        _
      %p141 = scmp.le.s32.totalorder 1, %s12
      %p142 = scmp.lt.s32.totalorder %s12, 3
      %p143 = pnand %p141, %p142
      %p144 = pneg %p143
      // Predicated region
      $region29: #{vit_patch_forward.1} parent=5 // pred_check
        _
      $region30: #{vit_patch_forward.1} parent=5 // pred_check_branch
        %146 = sbr.rel (%p143) target = $region32
      $region31: #{vit_patch_forward.1} parent=5 // pred_region
        %s147 = ssub.s32 %s12, 1
        %s148 = smul.u32 4, %s17
        %p149 = scmp.lt.s32.totalorder %s148, 7
        %s150 = scalar_select %p149, %s148, 7
        %s151 = smul.addr %s150, 2
        %s152 = smul.addr %s151, 4
        %s153 = scalar_lea.vmem %s0, %s152
        %p154 = pneg %p38
        %p155 = pneg %p35
        %p156 = pneg %p59
        %p157 = pneg %p56
        %p158 = pneg %p80
        %p159 = pneg %p77
        %p160 = pneg %p106
        %p161 = pneg %p103
        %s162 = sand.u32 %s93, 1
        %s163 = scalar_lea.sflag [#allocation3], %s162
        %s164 = sand.u32 %s93, 1
        %s165 = smul.addr %s164, 32
        %s166 = scalar_lea.vmem [#allocation2], %s165
        %s167 = smul.u32 4, %s17
        %p168 = scmp.lt.s32.totalorder %s167, 7
        %s169 = scalar_select %p168, %s167, 7
        %s170 = smul.addr %s169, 2
        %s171 = smul.addr %s170, 4
        %s172 = scalar_lea.vmem %s0, %s171
        %s173 = smul.u32 4, %s17
        %s174 = smul.u32 4, %s17
        %v176 = vld [vmem:[%s172] sm:$0xff]
        %v177 = vld [vmem:[%s172 + $0x8] sm:$0xff]
        %v178 = vld [vmem:[%s172 + $0x10] sm:$0xff]
        %v179 = vld [vmem:[%s172 + $0x18] sm:$0xff]
        %v180 = vld [vmem:[%s1] sm:$0xf]
        %v181 = vld [vmem:[%s1 + $0x4] sm:$0xf]
        %v182 = vld [vmem:[%s1 + $0x8] sm:$0xf]
        %v183 = vld [vmem:[%s1 + $0xc] sm:$0xf]
        %v184 = vld [vmem:[%s1 + $0x10] sm:$0xf]
        %v185 = vld [vmem:[%s1 + $0x14] sm:$0xf]
        %v186 = vld [vmem:[%s1 + $0x18] sm:$0xf]
        %v187 = vld [vmem:[%s1 + $0x1c] sm:$0xf]
        %v188 = vld [vmem:[%s1 + $0x20] sm:$0xf]
        %v189 = vld [vmem:[%s1 + $0x24] sm:$0xf]
        %v190 = vld [vmem:[%s1 + $0x28] sm:$0xf]
        %v191 = vld [vmem:[%s1 + $0x2c] sm:$0xf]
        %v192 = vld [vmem:[%s1 + $0x30] sm:$0xf]
        %v193 = vld [vmem:[%s1 + $0x34] sm:$0xf]
        %v194 = vld [vmem:[%s1 + $0x38] sm:$0xf]
        %v195 = vld [vmem:[%s1 + $0x3c] sm:$0xf]
        %v196 = vld [vmem:[%s1 + $0x40] sm:$0xf]
        %v197 = vld [vmem:[%s1 + $0x44] sm:$0xf]
        %v198 = vld [vmem:[%s1 + $0x48] sm:$0xf]
        %v199 = vld [vmem:[%s1 + $0x4c] sm:$0xf]
        %v200 = vld [vmem:[%s1 + $0x50] sm:$0xf]
        %v201 = vld [vmem:[%s1 + $0x54] sm:$0xf]
        %v202 = vld [vmem:[%s1 + $0x58] sm:$0xf]
        %v203 = vld [vmem:[%s1 + $0x5c] sm:$0xf]
        %v204 = vld [vmem:[%s1 + $0x60] sm:$0xf]
        %v205 = vld [vmem:[%s1 + $0x64] sm:$0xf]
        %v206 = vld [vmem:[%s1 + $0x68] sm:$0xf]
        %v207 = vld [vmem:[%s1 + $0x6c] sm:$0xf]
        %v208 = vld [vmem:[%s1 + $0x70] sm:$0xf]
        %v209 = vld [vmem:[%s1 + $0x74] sm:$0xf]
        %v210 = vld [vmem:[%s1 + $0x78] sm:$0xf]
        %v211 = vld [vmem:[%s1 + $0x7c] sm:$0xf]
        %v212 = vld [vmem:[%s2] sm:$0x1]
        %v214 = vlaneseq
        %v215 = vshrl.u32 %v214, 7
        %v216 = vsub.s32 0, %v215
        %v217 = vrot.slane %v212, %v216
        %v223 = vunpack.c.l.b16 %v176
        %v224 = vunpack.c.h.b16 %v176
        %v225 = vunpack.c.l.b16 %v177
        %v226 = vunpack.c.h.b16 %v177
        %v227 = vunpack.c.l.b16 %v178
        %v228 = vunpack.c.h.b16 %v178
        %v229 = vunpack.c.l.b16 %v179
        %v230 = vunpack.c.h.b16 %v179
        %v231 = vpack.c.b16 %v225, %v223
        %v232 = vpack.c.b16 %v226, %v224
        %v233 = vpack.c.b16 %v229, %v227
        %v234 = vpack.c.b16 %v230, %v228
        %v271 = vunpack.c.l.b16 %v180
        %v272 = vunpack.c.l.b16 %v181
        %v273 = vunpack.c.l.b16 %v182
        %v274 = vunpack.c.l.b16 %v183
        %v275 = vunpack.c.l.b16 %v184
        %v276 = vunpack.c.l.b16 %v185
        %v277 = vunpack.c.l.b16 %v186
        %v278 = vunpack.c.l.b16 %v187
        %v279 = vunpack.c.l.b16 %v188
        %v280 = vunpack.c.l.b16 %v189
        %v281 = vunpack.c.l.b16 %v190
        %v282 = vunpack.c.l.b16 %v191
        %v283 = vunpack.c.l.b16 %v192
        %v284 = vunpack.c.l.b16 %v193
        %v285 = vunpack.c.l.b16 %v194
        %v286 = vunpack.c.l.b16 %v195
        %v287 = vunpack.c.l.b16 %v196
        %v288 = vunpack.c.l.b16 %v197
        %v289 = vunpack.c.l.b16 %v198
        %v290 = vunpack.c.l.b16 %v199
        %v291 = vunpack.c.l.b16 %v200
        %v292 = vunpack.c.l.b16 %v201
        %v293 = vunpack.c.l.b16 %v202
        %v294 = vunpack.c.l.b16 %v203
        %v295 = vunpack.c.l.b16 %v204
        %v296 = vunpack.c.l.b16 %v205
        %v297 = vunpack.c.l.b16 %v206
        %v298 = vunpack.c.l.b16 %v207
        %v299 = vunpack.c.l.b16 %v208
        %v300 = vunpack.c.l.b16 %v209
        %v301 = vunpack.c.l.b16 %v210
        %v302 = vunpack.c.l.b16 %v211
        %v303 = vpack.c.b16 %v272, %v271
        %v304 = vpack.c.b16 %v274, %v273
        %v305 = vpack.c.b16 %v276, %v275
        %v306 = vpack.c.b16 %v278, %v277
        %v307 = vpack.c.b16 %v280, %v279
        %v308 = vpack.c.b16 %v282, %v281
        %v309 = vpack.c.b16 %v284, %v283
        %v310 = vpack.c.b16 %v286, %v285
        %v311 = vpack.c.b16 %v288, %v287
        %v312 = vpack.c.b16 %v290, %v289
        %v313 = vpack.c.b16 %v292, %v291
        %v314 = vpack.c.b16 %v294, %v293
        %v315 = vpack.c.b16 %v296, %v295
        %v316 = vpack.c.b16 %v298, %v297
        %v317 = vpack.c.b16 %v300, %v299
        %v318 = vpack.c.b16 %v302, %v301
        %335 = vmatprep.subr.bf16.mxu0 0
        %336 = vmatpush1.bf16.msra.mxu0 %v303
        %337 = vmatprep.subr.bf16.mxu0 0
        %338 = vmatpush1.bf16.msra.mxu0 %v304
        %339 = vmatprep.subr.bf16.mxu0 0
        %340 = vmatpush1.bf16.msra.mxu0 %v305
        %341 = vmatprep.subr.bf16.mxu0 0
        %342 = vmatpush1.bf16.msra.mxu0 %v306
        %343 = vmatprep.subr.bf16.mxu0 0
        %344 = vmatpush1.bf16.msra.mxu0 %v307
        %345 = vmatprep.subr.bf16.mxu0 0
        %346 = vmatpush1.bf16.msra.mxu0 %v308
        %347 = vmatprep.subr.bf16.mxu0 0
        %348 = vmatpush1.bf16.msra.mxu0 %v309
        %349 = vmatprep.subr.bf16.mxu0 0
        %350 = vmatpush1.bf16.msra.mxu0 %v310
        %351 = vmatprep.subr.bf16.mxu0 0
        %352 = vmatpush1.bf16.msra.mxu0 %v311
        %353 = vmatprep.subr.bf16.mxu0 0
        %354 = vmatpush1.bf16.msra.mxu0 %v312
        %355 = vmatprep.subr.bf16.mxu0 0
        %356 = vmatpush1.bf16.msra.mxu0 %v313
        %357 = vmatprep.subr.bf16.mxu0 0
        %358 = vmatpush1.bf16.msra.mxu0 %v314
        %359 = vmatprep.subr.bf16.mxu0 0
        %360 = vmatpush1.bf16.msra.mxu0 %v315
        %361 = vmatprep.subr.bf16.mxu0 0
        %362 = vmatpush1.bf16.msra.mxu0 %v316
        %363 = vmatprep.subr.bf16.mxu0 0
        %364 = vmatpush1.bf16.msra.mxu0 %v317
        %365 = vmatprep.subr.bf16.mxu0 0
        %366 = vmatpush1.bf16.msra.mxu0 %v318
        %367 = vmatprep.mubr.bf16.mxu0 %v232
        %368 = vmatmul.mubr.bf16.gmra.mrb[0].mxu0 %v231
        %v369 = vpop.f32.mrb[0].mxu0
        %v370 = vadd.f32 %v217, %v369
        %v371 = vpop.f32.mrb[0].mxu0
        %v372 = vpop.f32.mrb[0].mxu0
        %v373 = vadd.f32 %v217, %v372
        %v374 = vpop.f32.mrb[0].mxu0
        %375 = vmatprep.mubr.bf16.mxu0 %v234
        %376 = vmatmul.mubr.bf16.gmra.mrb[0].mxu0 %v233
        %v377 = vpop.f32.mrb[0].mxu0
        %v378 = vadd.f32 %v217, %v377
        %v379 = vpop.f32.mrb[0].mxu0
        %v380 = vpop.f32.mrb[0].mxu0
        %v381 = vadd.f32 %v217, %v380
        %v382 = vpop.f32.mrb[0].mxu0
        %383 = vdwg.mxu0
        %384 = vst [vmem:[%s166] sm:$0xff] %v370
        %385 = vst [vmem:[%s166 + $0x8] sm:$0xff] %v373
        %386 = vst [vmem:[%s166 + $0x10] sm:$0xff] %v378
        %387 = vst [vmem:[%s166 + $0x18] sm:$0xff] %v381
        %s388 = sand.u32 %s93, 1
        %s389 = scalar_lea.sflag [#allocation3], %s388
        %s390 = sand.u32 %s93, 1
        %s391 = smul.addr %s390, 32
        %s392 = scalar_lea.vmem [#allocation2], %s391
        // Predicated region
        $region33: #{vit_patch_forward.1} parent=31 // pred_check
          %p393 = pneg %p103
        $region34: #{vit_patch_forward.1} parent=31 // pred_check_branch
          %395 = sbr.rel (%p393) target = $region36
        $region35: #{vit_patch_forward.1} parent=31 // pred_region
          %s396 = smul.u32 4, %s17
          %s398 = ssub.s32 512, 512
          %399 = vsyncadd %s389, %s398
          %s400 = smul.addr %s396, 128
          %s401 = scalar_lea.hbm %s3, %s400
          %s402 = sshll.u32 %s392, 4
          %s403 = int_to_ptr.vmem [resolvable:$true] %s402
          %408 = dma.vmem_to_hbm [thread:$0]  %s403, 512, %s401, %s389, 128, 128, 8
        $region36: #{vit_patch_forward.1} parent=31 // pred_fallthru
          _
      $region32: #{vit_patch_forward.1} parent=5 // pred_fallthru
        _
      %p409 = scmp.le.s32.totalorder 2, %s12
      // Predicated region
      $region37: #{vit_patch_forward.1} parent=5 // pred_check
        %p410 = pneg %p409
      $region38: #{vit_patch_forward.1} parent=5 // pred_check_branch
        %412 = sbr.rel (%p410) target = $region40
      $region39: #{vit_patch_forward.1} parent=5 // pred_region
        %s413 = ssub.s32 %s12, 2
        // Predicated region
        $region41: #{vit_patch_forward.1} parent=39 // pred_check
          %p414 = pneg %p109
        $region42: #{vit_patch_forward.1} parent=39 // pred_check_branch
          %416 = sbr.rel (%p414) target = $region44
        $region43: #{vit_patch_forward.1} parent=39 // pred_region
          %s417 = sand.u32 %s94, 1
          %s418 = scalar_lea.sflag [#allocation3], %s417
          %s419 = sand.u32 %s94, 1
          %s420 = smul.addr %s419, 32
          %s421 = scalar_lea.vmem [#allocation2], %s420
          %422 = dma.done %s418, 512
        $region44: #{vit_patch_forward.1} parent=39 // pred_fallthru
          _
      $region40: #{vit_patch_forward.1} parent=5 // pred_fallthru
        _
    $region6: #{vit_patch_forward.1} parent=1 // loop_footer
      %s16 = sadd.s32 1, %s12
    $region7: #{vit_patch_forward.1} parent=1 // loop_footer_branch
      %11 = sbr.rel target = $region3
    $region8: #{vit_patch_forward.1} parent=1 // loop_exit
      _
    %423 = vsyncpa [#allocation3], 1
    %s424 = scalar_lea.sflag [#allocation3], 1
    %425 = vsyncpa %s424, 1

</llo_original>
